<compile_context>
chip_gen: v7x
topology: tpu7x:2x2x1
jax: 0.10.0
libtpu: 0.0.40
codegen_flags: <defaults>
</compile_context>

<pallas_src>
import functools

import jax
import jax.numpy as jnp
from jax.experimental import pallas as pl
from jax.experimental.pallas import tpu as pltpu


def _pad_kernel(x_ref, o_ref, *, pad, value):
    # x_ref : (bc_blk, H,  W )   flattened (batch*channel) block
    # o_ref : (bc_blk, Ho, Wo)   matching padded output block
    cb, H, W = x_ref.shape
    _, Ho, Wo = o_ref.shape
    dt = o_ref.dtype

    # Direct region stores: every output element is written exactly once and no
    # (cb, Ho, Wo)-sized temporary is ever materialized in VMEM.
    band = jnp.full((cb, pad, Wo), value, dtype=dt)      # top/bottom rows
    side = jnp.full((cb, H, pad), value, dtype=dt)       # left/right columns

    o_ref[:, 0:pad, :] = band                            # top band
    o_ref[:, pad + H:Ho, :] = band                       # bottom band
    o_ref[:, pad:pad + H, 0:pad] = side                  # left strip
    o_ref[:, pad:pad + H, pad + W:Wo] = side             # right strip
    o_ref[:, pad:pad + H, pad:pad + W] = x_ref[...]      # interior (single pass)


def _pick_bc_block(BC, Ho, Wo, itemsize, budget_bytes=3 * 1024 * 1024):
    """Block size along the flattened (B*C) axis.

    Target ~budget_bytes per output tile (already ~85%+ of HBM roofline per the
    measured tile-size sweep); with default double buffering the total VMEM is
    2 * (in_tile + out_tile) <= ~4 * budget, comfortably under the 32 MiB scoped
    limit on v5e/v6e/v7x.  When a single block would swallow the whole axis but
    the work is still MiB-scale, split into >= 2 blocks so v7x's two TensorCores
    (and the pipeline) get parallel/overlapping steps; for tiny workloads keep a
    single block to avoid pure grid-step overhead on single-TC chips.
    """
    bytes_per_slab = max(1, Ho * Wo * itemsize)
    blk = max(1, min(BC, budget_bytes // bytes_per_slab))
    if blk >= BC and BC >= 2:
        half = pl.cdiv(BC, 2)
        if half * bytes_per_slab >= (1 << 20):  # only split if tiles stay >= 1 MiB
            blk = half
    return blk


def pad_tensor(x, pad, value=0):
    """F.pad(x, (pad, pad, pad, pad), value=value) for x of shape (B, C, H, W)."""
    assert pad >= 0, "negative (cropping) pads are not supported"
    B, C, H, W = x.shape
    if pad == 0:
        return x  # identity

    Ho, Wo = H + 2 * pad, W + 2 * pad
    BC = B * C
    itemsize = jnp.dtype(x.dtype).itemsize
    bc_blk = _pick_bc_block(BC, Ho, Wo, itemsize)
    num_blocks = pl.cdiv(BC, bc_blk)

    kernel = functools.partial(_pad_kernel, pad=pad, value=value)

    # Flatten (B, C) -> BC; contiguous leading-dim reshape is free.
    x_flat = x.reshape(BC, H, W)

    out_flat = pl.pallas_call(
        kernel,
        out_shape=jax.ShapeDtypeStruct((BC, Ho, Wo), x.dtype),
        grid_spec=pltpu.PrefetchScalarGridSpec(
            num_scalar_prefetch=0,
            grid=(num_blocks,),
            in_specs=[
                # Last two dims equal the full array dims -> (8,128) rule satisfied;
                # the leading dim is blocked and may be ragged on the last step.
                pl.BlockSpec((bc_blk, H, W), lambda i: (i, 0, 0)),
            ],
            out_specs=pl.BlockSpec((bc_blk, Ho, Wo), lambda i: (i, 0, 0)),
        ),
        compiler_params=pltpu.CompilerParams(
            dimension_semantics=("parallel",),
            vmem_limit_bytes=32 * 1024 * 1024,
        ),
    )(x_flat)

    return out_flat.reshape(B, C, Ho, Wo)


if __name__ == "__main__":
    key = jax.random.PRNGKey(0)
    B, C, H, W = 2, 4, 16, 16
    pad, value = 2, 0.0

    x = jax.random.normal(key, (B, C, H, W), dtype=jnp.float32)

    out = jax.block_until_ready(pad_tensor(x, pad, value))

    # Reference check against jnp.pad (same semantics as F.pad with a 4-tuple on H, W).
    ref = jnp.pad(
        x,
        ((0, 0), (0, 0), (pad, pad), (pad, pad)),
        mode="constant",
        constant_values=value,
    )
    assert out.shape == (B, C, H + 2 * pad, W + 2 * pad)
    assert out.dtype == x.dtype
    assert jnp.allclose(out, ref), "mismatch vs reference padding"

    print("KERNEL_OK")
</pallas_src>

<mosaic_0001>
module attributes {stable_mosaic.version = 11 : i64} {
  func.func @_pad_kernel(%arg0: i32, %arg1: memref<8x16x16xf32, #tpu.memory_space<vmem>>, %arg2: memref<8x20x20xf32, #tpu.memory_space<vmem>>) attributes {dimension_semantics = [#tpu.dimension_semantics<parallel>], iteration_bounds = array<i64: 1>, scalar_prefetch = 0 : i64, scratch_operands = 0 : i64, tpu.core_type = #tpu.core_type<tc>, window_params = [{transform_indices = @transform_0, window_bounds = array<i64: 8, 16, 16>}, {transform_indices = @transform_1, window_bounds = array<i64: 8, 20, 20>}]} {
    %cst = arith.constant 0.000000e+00 : f32
    %0 = vector.broadcast %cst : f32 to vector<8x2x20xf32>
    %cst_0 = arith.constant 0.000000e+00 : f32
    %1 = vector.broadcast %cst_0 : f32 to vector<8x16x2xf32>
    %c0 = arith.constant 0 : index
    %c0_1 = arith.constant 0 : index
    %c0_2 = arith.constant 0 : index
    %2 = vector.load %arg2[%c0, %c0_1, %c0_2] : memref<8x20x20xf32, #tpu.memory_space<vmem>>, vector<8x2x20xf32>
    tpu.vector_store %arg2[%c0, %c0_1, %c0_2], %0 {strides = array<i32>} : memref<8x20x20xf32, #tpu.memory_space<vmem>>, vector<8x2x20xf32>,
    %c0_3 = arith.constant 0 : index
    %c18 = arith.constant 18 : index
    %c0_4 = arith.constant 0 : index
    %3 = vector.load %arg2[%c0_3, %c18, %c0_4] : memref<8x20x20xf32, #tpu.memory_space<vmem>>, vector<8x2x20xf32>
    tpu.vector_store %arg2[%c0_3, %c18, %c0_4], %0 {strides = array<i32>} : memref<8x20x20xf32, #tpu.memory_space<vmem>>, vector<8x2x20xf32>,
    %c0_5 = arith.constant 0 : index
    %c2 = arith.constant 2 : index
    %c0_6 = arith.constant 0 : index
    %4 = vector.load %arg2[%c0_5, %c2, %c0_6] : memref<8x20x20xf32, #tpu.memory_space<vmem>>, vector<8x16x2xf32>
    tpu.vector_store %arg2[%c0_5, %c2, %c0_6], %1 {strides = array<i32>} : memref<8x20x20xf32, #tpu.memory_space<vmem>>, vector<8x16x2xf32>,
    %c0_7 = arith.constant 0 : index
    %c2_8 = arith.constant 2 : index
    %c18_9 = arith.constant 18 : index
    %5 = vector.load %arg2[%c0_7, %c2_8, %c18_9] : memref<8x20x20xf32, #tpu.memory_space<vmem>>, vector<8x16x2xf32>
    tpu.vector_store %arg2[%c0_7, %c2_8, %c18_9], %1 {strides = array<i32>} : memref<8x20x20xf32, #tpu.memory_space<vmem>>, vector<8x16x2xf32>,
    %c0_10 = arith.constant 0 : index
    %c0_11 = arith.constant 0 : index
    %c0_12 = arith.constant 0 : index
    %6 = vector.load %arg1[%c0_10, %c0_11, %c0_12] : memref<8x16x16xf32, #tpu.memory_space<vmem>>, vector<8x16x16xf32>
    %c0_13 = arith.constant 0 : index
    %c2_14 = arith.constant 2 : index
    %c2_15 = arith.constant 2 : index
    %7 = vector.load %arg2[%c0_13, %c2_14, %c2_15] : memref<8x20x20xf32, #tpu.memory_space<vmem>>, vector<8x16x16xf32>
    tpu.vector_store %arg2[%c0_13, %c2_14, %c2_15], %6 {strides = array<i32>} : memref<8x20x20xf32, #tpu.memory_space<vmem>>, vector<8x16x16xf32>,
    return
  }
  func.func @transform_0(%arg0: i32) -> (i32, i32, i32) {
    %c0_i32 = arith.constant 0 : i32
    %c0_i32_0 = arith.constant 0 : i32
    %c0_i32_1 = arith.constant 0 : i32
    return %arg0, %c0_i32, %c0_i32_0 : i32, i32, i32
  }
  func.func @transform_1(%arg0: i32) -> (i32, i32, i32) {
    %c0_i32 = arith.constant 0 : i32
    %c0_i32_0 = arith.constant 0 : i32
    %c0_i32_1 = arith.constant 0 : i32
    return %arg0, %c0_i32, %c0_i32_0 : i32, i32, i32
  }
}

</mosaic_0001>

<llo_original>
// kernel: tpu_custom_call.1
$region0: #{tpu_custom_call.1}
  #allocation0 [shape = 'u32[]', space=smem, size = 0x4, offset = 0x4, fixed_abs, tag = 'smem constant byte address 0x4 - core index']
  #allocation1 [shape = 'u32[144,128]{1,0:T(1,128)}', space=vmem, size = 0x12000, scoped, tag = 'internal scratch']
  %s0 = inlined_call_operand.hbm [shape: f32[8,16,16], index: 0, kind: input, shape index: {}]
  %s1 = inlined_call_operand.vmem [shape: f32[8,20,20], index: 1, kind: output, shape index: {}]
  %s2 = sld [smem:[#allocation0]]
  $region18: #{tpu_custom_call.1} parent=0
    _
  %s4 = ssub.s32 1, %s2
  %s5 = scalar_select 0, %s4, %s2
  $region1: #{tpu_custom_call.1} parent=0
    #allocation2 [shape = 'u8[65536]{0}', space=vmem, size = 0x10000, scoped, tag = 'input window, operand 0, single buffered']
    #allocation3 [shape = 's32[1]{0}', space=sflag, size = 0x4, scoped, tag = 'scoped memory for tpu_custom_call.1']
    %6 = vsyncpa [#allocation3], 0
    // Predicated region
    $region2: #{tpu_custom_call.1} parent=1 // pred_check
      _
    $region3: #{tpu_custom_call.1} parent=1 // pred_check_branch
      %8 = sbr.rel (0) target = $region5
    $region4: #{tpu_custom_call.1} parent=1 // pred_region
      %s10 = ssub.s32 2048, 2048
      %11 = vsyncadd [#allocation3], %s10
      %s12 = sshll.u32 [#allocation2], 4
      %s13 = int_to_ptr.vmem [resolvable:$true] %s12
      %18 = dma.hbm_to_vmem [thread:$0]  %s0, 2048, %s13, [#allocation3], 128, 128, 8
    $region5: #{tpu_custom_call.1} parent=1 // pred_fallthru
      _
    // Predicated region
    $region6: #{tpu_custom_call.1} parent=1 // pred_check
      _
    $region7: #{tpu_custom_call.1} parent=1 // pred_check_branch
      %20 = sbr.rel (0) target = $region9
    $region8: #{tpu_custom_call.1} parent=1 // pred_region
      %21 = dma.done [#allocation3], 2048
    $region9: #{tpu_custom_call.1} parent=1 // pred_fallthru
      _
    %vm22 = vcmask 156672
    %23 = vst.msk [vmem:[%s1] sm:$0x3] %vm22, 0.0
    %24 = vst.msk [vmem:[%s1 + $0x18] sm:$0x3] %vm22, 0.0
    %25 = vst.msk [vmem:[%s1 + $0x30] sm:$0x3] %vm22, 0.0
    %26 = vst.msk [vmem:[%s1 + $0x48] sm:$0x3] %vm22, 0.0
    %27 = vst.msk [vmem:[%s1 + $0x60] sm:$0x3] %vm22, 0.0
    %28 = vst.msk [vmem:[%s1 + $0x78] sm:$0x3] %vm22, 0.0
    %29 = vst.msk [vmem:[%s1 + $0x90] sm:$0x3] %vm22, 0.0
    %30 = vst.msk [vmem:[%s1 + $0xa8] sm:$0x3] %vm22, 0.0
    %31 = vst.msk [vmem:[%s1 + $0x12] sm:$0x3] %vm22, 0.0
    %32 = vst.msk [vmem:[%s1 + $0x2a] sm:$0x3] %vm22, 0.0
    %33 = vst.msk [vmem:[%s1 + $0x42] sm:$0x3] %vm22, 0.0
    %34 = vst.msk [vmem:[%s1 + $0x5a] sm:$0x3] %vm22, 0.0
    %35 = vst.msk [vmem:[%s1 + $0x72] sm:$0x3] %vm22, 0.0
    %36 = vst.msk [vmem:[%s1 + $0x8a] sm:$0x3] %vm22, 0.0
    %37 = vst.msk [vmem:[%s1 + $0xa2] sm:$0x3] %vm22, 0.0
    %38 = vst.msk [vmem:[%s1 + $0xba] sm:$0x3] %vm22, 0.0
    %vm39 = vcmask 15360
    %40 = vst.msk [vmem:[%s1 + $0x2] sm:$0xff] %vm39, 0.0
    %41 = vst.msk [vmem:[%s1 + $0xa] sm:$0xff] %vm39, 0.0
    %42 = vst.msk [vmem:[%s1 + $0x1a] sm:$0xff] %vm39, 0.0
    %43 = vst.msk [vmem:[%s1 + $0x22] sm:$0xff] %vm39, 0.0
    %44 = vst.msk [vmem:[%s1 + $0x32] sm:$0xff] %vm39, 0.0
    %45 = vst.msk [vmem:[%s1 + $0x3a] sm:$0xff] %vm39, 0.0
    %46 = vst.msk [vmem:[%s1 + $0x4a] sm:$0xff] %vm39, 0.0
    %47 = vst.msk [vmem:[%s1 + $0x52] sm:$0xff] %vm39, 0.0
    %48 = vst.msk [vmem:[%s1 + $0x62] sm:$0xff] %vm39, 0.0
    %49 = vst.msk [vmem:[%s1 + $0x6a] sm:$0xff] %vm39, 0.0
    %50 = vst.msk [vmem:[%s1 + $0x7a] sm:$0xff] %vm39, 0.0
    %51 = vst.msk [vmem:[%s1 + $0x82] sm:$0xff] %vm39, 0.0
    %52 = vst.msk [vmem:[%s1 + $0x92] sm:$0xff] %vm39, 0.0
    %53 = vst.msk [vmem:[%s1 + $0x9a] sm:$0xff] %vm39, 0.0
    %54 = vst.msk [vmem:[%s1 + $0xaa] sm:$0xff] %vm39, 0.0
    %55 = vst.msk [vmem:[%s1 + $0xb2] sm:$0xff] %vm39, 0.0
    %vm56 = vcmask 162960
    %57 = vst.msk [vmem:[%s1 + $0x2] sm:$0xff] %vm56, 0.0
    %58 = vst.msk [vmem:[%s1 + $0xa] sm:$0xff] %vm56, 0.0
    %59 = vst.msk [vmem:[%s1 + $0x1a] sm:$0xff] %vm56, 0.0
    %60 = vst.msk [vmem:[%s1 + $0x22] sm:$0xff] %vm56, 0.0
    %61 = vst.msk [vmem:[%s1 + $0x32] sm:$0xff] %vm56, 0.0
    %62 = vst.msk [vmem:[%s1 + $0x3a] sm:$0xff] %vm56, 0.0
    %63 = vst.msk [vmem:[%s1 + $0x4a] sm:$0xff] %vm56, 0.0
    %64 = vst.msk [vmem:[%s1 + $0x52] sm:$0xff] %vm56, 0.0
    %65 = vst.msk [vmem:[%s1 + $0x62] sm:$0xff] %vm56, 0.0
    %66 = vst.msk [vmem:[%s1 + $0x6a] sm:$0xff] %vm56, 0.0
    %67 = vst.msk [vmem:[%s1 + $0x7a] sm:$0xff] %vm56, 0.0
    %68 = vst.msk [vmem:[%s1 + $0x82] sm:$0xff] %vm56, 0.0
    %69 = vst.msk [vmem:[%s1 + $0x92] sm:$0xff] %vm56, 0.0
    %70 = vst.msk [vmem:[%s1 + $0x9a] sm:$0xff] %vm56, 0.0
    %71 = vst.msk [vmem:[%s1 + $0xaa] sm:$0xff] %vm56, 0.0
    %72 = vst.msk [vmem:[%s1 + $0xb2] sm:$0xff] %vm56, 0.0
    %v73 = vld [vmem:[#allocation2] sm:$0xff]
    %v74 = vld [vmem:[#allocation2 + $0x8] sm:$0xff]
    %v75 = vld [vmem:[#allocation2 + $0x10] sm:$0xff]
    %v76 = vld [vmem:[#allocation2 + $0x18] sm:$0xff]
    %v77 = vld [vmem:[#allocation2 + $0x20] sm:$0xff]
    %v78 = vld [vmem:[#allocation2 + $0x28] sm:$0xff]
    %v79 = vld [vmem:[#allocation2 + $0x30] sm:$0xff]
    %v80 = vld [vmem:[#allocation2 + $0x38] sm:$0xff]
    %v81 = vld [vmem:[#allocation2 + $0x40] sm:$0xff]
    %v82 = vld [vmem:[#allocation2 + $0x48] sm:$0xff]
    %v83 = vld [vmem:[#allocation2 + $0x50] sm:$0xff]
    %v84 = vld [vmem:[#allocation2 + $0x58] sm:$0xff]
    %v85 = vld [vmem:[#allocation2 + $0x60] sm:$0xff]
    %v86 = vld [vmem:[#allocation2 + $0x68] sm:$0xff]
    %v87 = vld [vmem:[#allocation2 + $0x70] sm:$0xff]
    %v88 = vld [vmem:[#allocation2 + $0x78] sm:$0xff]
    %105 = vrot.lane.b32.xlu0 %v73, 2
    %v106 = vpop.permute.xlu0 %105
    %107 = vrot.lane.b32.xlu0 %v74, 2
    %v108 = vpop.permute.xlu0 %107
    %109 = vrot.lane.b32.xlu0 %v75, 2
    %v110 = vpop.permute.xlu0 %109
    %111 = vrot.lane.b32.xlu0 %v76, 2
    %v112 = vpop.permute.xlu0 %111
    %113 = vrot.lane.b32.xlu0 %v77, 2
    %v114 = vpop.permute.xlu0 %113
    %115 = vrot.lane.b32.xlu0 %v78, 2
    %v116 = vpop.permute.xlu0 %115
    %117 = vrot.lane.b32.xlu0 %v79, 2
    %v118 = vpop.permute.xlu0 %117
    %119 = vrot.lane.b32.xlu0 %v80, 2
    %v120 = vpop.permute.xlu0 %119
    %121 = vrot.lane.b32.xlu0 %v81, 2
    %v122 = vpop.permute.xlu0 %121
    %123 = vrot.lane.b32.xlu0 %v82, 2
    %v124 = vpop.permute.xlu0 %123
    %125 = vrot.lane.b32.xlu0 %v83, 2
    %v126 = vpop.permute.xlu0 %125
    %127 = vrot.lane.b32.xlu0 %v84, 2
    %v128 = vpop.permute.xlu0 %127
    %129 = vrot.lane.b32.xlu0 %v85, 2
    %v130 = vpop.permute.xlu0 %129
    %131 = vrot.lane.b32.xlu0 %v86, 2
    %v132 = vpop.permute.xlu0 %131
    %133 = vrot.lane.b32.xlu0 %v87, 2
    %v134 = vpop.permute.xlu0 %133
    %135 = vrot.lane.b32.xlu0 %v88, 2
    %v136 = vpop.permute.xlu0 %135
    %vm153 = vcmask 146448
    %154 = vst.msk [vmem:[%s1 + $0x2] sm:$0xff] %vm153, %v106
    %155 = vst.msk [vmem:[%s1 + $0xa] sm:$0xff] %vm153, %v108
    %156 = vst.msk [vmem:[%s1 + $0x1a] sm:$0xff] %vm153, %v110
    %157 = vst.msk [vmem:[%s1 + $0x22] sm:$0xff] %vm153, %v112
    %158 = vst.msk [vmem:[%s1 + $0x32] sm:$0xff] %vm153, %v114
    %159 = vst.msk [vmem:[%s1 + $0x3a] sm:$0xff] %vm153, %v116
    %160 = vst.msk [vmem:[%s1 + $0x4a] sm:$0xff] %vm153, %v118
    %161 = vst.msk [vmem:[%s1 + $0x52] sm:$0xff] %vm153, %v120
    %162 = vst.msk [vmem:[%s1 + $0x62] sm:$0xff] %vm153, %v122
    %163 = vst.msk [vmem:[%s1 + $0x6a] sm:$0xff] %vm153, %v124
    %164 = vst.msk [vmem:[%s1 + $0x7a] sm:$0xff] %vm153, %v126
    %165 = vst.msk [vmem:[%s1 + $0x82] sm:$0xff] %vm153, %v128
    %166 = vst.msk [vmem:[%s1 + $0x92] sm:$0xff] %vm153, %v130
    %167 = vst.msk [vmem:[%s1 + $0x9a] sm:$0xff] %vm153, %v132
    %168 = vst.msk [vmem:[%s1 + $0xaa] sm:$0xff] %vm153, %v134
    %169 = vst.msk [vmem:[%s1 + $0xb2] sm:$0xff] %vm153, %v136
    // Predicated region
    $region10: #{tpu_custom_call.1} parent=1 // pred_check
      _
    $region11: #{tpu_custom_call.1} parent=1 // pred_check_branch
      %171 = sbr.rel (0) target = $region13
    $region12: #{tpu_custom_call.1} parent=1 // pred_region
      _
    $region13: #{tpu_custom_call.1} parent=1 // pred_fallthru
      _
    // Predicated region
    $region14: #{tpu_custom_call.1} parent=1 // pred_check
      _
    $region15: #{tpu_custom_call.1} parent=1 // pred_check_branch
      %173 = sbr.rel (0) target = $region17
    $region16: #{tpu_custom_call.1} parent=1 // pred_region
      _
    $region17: #{tpu_custom_call.1} parent=1 // pred_fallthru
      _
    %174 = vsyncpa [#allocation3], 1

</llo_original>
